<compile_context>
chip_gen: v6e
topology: v6e:2x2x1
jax: 0.10.0
libtpu: 0.0.40
codegen_flags: <defaults>
</compile_context>

<pallas_src>
import functools

import jax
import jax.numpy as jnp
from jax.experimental import pallas as pl
from jax.experimental.pallas import tpu as pltpu


_ACTIVATIONS = {
    "tanh": jnp.tanh,
    "relu": lambda z: jnp.maximum(z, 0.0),
}


def _round_up(x, m):
    return (x + m - 1) // m * m


def _cdiv(a, b):
    return (a + b - 1) // b


def _mlp_critic_kernel(xt_ref, w1t_ref, b1_ref, w2t_ref, b2_ref, w3_ref, b3_ref,
                       out_ref, *, activation):
    act = _ACTIVATIONS[activation]
    cdt = w1t_ref.dtype            # MXU operand dtype (bf16 on the fast path)

    xt = xt_ref[...]               # (obs_dim, bm), already in compute dtype

    # Layer 1: Linear -> activation, transposed orientation.
    # MXU matmul with f32 accumulation; bias add + activation in f32.
    z1 = jnp.dot(w1t_ref[...], xt, preferred_element_type=jnp.float32) + b1_ref[...]
    h1 = act(z1).astype(cdt)                                   # (h0, bm)

    # Layer 2: Linear -> activation.
    z2 = jnp.dot(w2t_ref[...], h1, preferred_element_type=jnp.float32) + b2_ref[...]
    h2 = act(z2)                                               # (h1, bm), stays f32

    # Value head (out_features == 1, Identity output activation): elementwise
    # multiply by the f32 weight column + sublane reduction (XLU) gives the
    # lane-dense (1, bm) result row directly.
    v = jnp.sum(h2 * w3_ref[...], axis=0, keepdims=True) + b3_ref[...]
    out_ref[...] = v.astype(out_ref.dtype)


def mlp_critic_forward(obs, params, *, activation="tanh",
                       block_batch=512, compute_dtype=jnp.bfloat16):
    """MLPCritic forward: obs [B, obs_dim] -> values [B].

    Params are stored as (W.T, bias) per layer, i.e. weights of shape
    (in_features, out_features); the wrapper re-lays them out for the
    transposed kernel.  Set compute_dtype=jnp.float32 for f32-operand matmuls
    (closer to PyTorch bit-level behavior, slower on the MXU).
    """
    w1, b1, w2, b2, w3, b3 = params
    B, obs_dim = obs.shape
    h0 = w1.shape[1]
    h1 = w2.shape[1]

    # Batch tile: batch lives on the lane axis of every block -> multiple of 128.
    bm = min(block_batch, _round_up(B, 128))
    if B > 128:
        # Keep the grid at >= 2 steps so ("parallel",) shards across both
        # TensorCores on v7x (v5e/v6e are single-TC; harmless there).
        bm = min(bm, _round_up(_cdiv(B, 2), 128))
    Bp = _round_up(B, bm)

    # Single fused wrapper pass: cast + transpose (+ pad ragged batch tail).
    # Padded columns are zeros and are sliced off after the kernel.
    obs_t = obs.astype(compute_dtype).T                       # (obs_dim, B)
    if Bp != B:
        obs_t = jnp.pad(obs_t, ((0, 0), (0, Bp - B)))         # (obs_dim, Bp)

    # Transposed weight layout; MXU operands in compute dtype, everything the
    # VPU/EUP touches (biases, value-head weights) stays f32 (v5e-safe).
    w1t = w1.T.astype(compute_dtype)                          # (h0, obs_dim)
    w2t = w2.T.astype(compute_dtype)                          # (h1, h0)
    b1c = b1.reshape(h0, 1).astype(jnp.float32)
    b2c = b2.reshape(h1, 1).astype(jnp.float32)
    w3c = w3.reshape(h1, 1).astype(jnp.float32)
    b3c = b3.reshape(1, 1).astype(jnp.float32)

    flops = 2 * Bp * (obs_dim * h0 + h0 * h1 + h1)
    transcendentals = Bp * (h0 + h1) if activation == "tanh" else 0
    bytes_accessed = (obs_t.size * obs_t.dtype.itemsize       # streamed input
                      + Bp * 4                                # (1, Bp) f32 output
                      + (w1t.size + w2t.size) * w1t.dtype.itemsize
                      + (b1c.size + b2c.size + w3c.size + b3c.size) * 4)

    kernel = functools.partial(_mlp_critic_kernel, activation=activation)
    out_row = pl.pallas_call(
        kernel,
        out_shape=jax.ShapeDtypeStruct((1, Bp), jnp.float32),
        grid=(Bp // bm,),
        in_specs=[
            pl.BlockSpec((obs_dim, bm), lambda i: (0, i)),    # activations stream
            pl.BlockSpec((h0, obs_dim), lambda i: (0, 0)),    # weights resident
            pl.BlockSpec((h0, 1), lambda i: (0, 0)),
            pl.BlockSpec((h1, h0), lambda i: (0, 0)),
            pl.BlockSpec((h1, 1), lambda i: (0, 0)),
            pl.BlockSpec((h1, 1), lambda i: (0, 0)),
            pl.BlockSpec((1, 1), lambda i: (0, 0)),
        ],
        out_specs=pl.BlockSpec((1, bm), lambda i: (0, i)),    # lane-dense output
        compiler_params=pltpu.CompilerParams(
            dimension_semantics=("parallel",)),               # megacore-shard batch
        cost_estimate=pl.CostEstimate(
            flops=flops, transcendentals=transcendentals,
            bytes_accessed=bytes_accessed),
    )(obs_t, w1t, b1c, w2t, b2c, w3c, b3c)

    # torch.squeeze(..., -1): value of row b lives in lane b; drop batch padding.
    return out_row[0, :B]


def make_params(key, obs_dim, hidden_sizes):
    """Deterministic synthetic init matching nn.Linear shapes (stored as W.T)."""
    sizes = [obs_dim] + list(hidden_sizes) + [1]
    ks = jax.random.split(key, 2 * (len(sizes) - 1))

    def u(k, shape, fan_in):
        bound = 1.0 / jnp.sqrt(fan_in)
        return jax.random.uniform(k, shape, jnp.float32, -bound, bound)

    params = []
    for j in range(len(sizes) - 1):
        params.append(u(ks[2 * j], (sizes[j], sizes[j + 1]), sizes[j]))      # W.T
        params.append(u(ks[2 * j + 1], (1, sizes[j + 1]), sizes[j]))         # bias
    return tuple(params)


def reference_forward(obs, params, *, activation="tanh", compute_dtype=jnp.bfloat16):
    """Pure-JAX reference mirroring the kernel's numerics (bf16 matmuls,
    f32 accumulate, f32 value head)."""
    w1, b1, w2, b2, w3, b3 = params
    act = _ACTIVATIONS[activation]
    c = compute_dtype
    h1 = act(jnp.dot(obs.astype(c), w1.astype(c), preferred_element_type=jnp.float32) + b1)
    h2 = act(jnp.dot(h1.astype(c), w2.astype(c), preferred_element_type=jnp.float32) + b2)
    v = jnp.dot(h2, w3.astype(jnp.float32)) + b3
    return v[:, 0]


if __name__ == "__main__":
    # Shapes consistent with a spinup PPO critic: obs -> (64, 64) -> 1, tanh.
    B = 300                  # deliberately not a tile multiple: exercises batch padding
    obs_dim = 32
    hidden_sizes = (64, 64)
    activation = "tanh"      # spinup default; "relu" also supported

    key = jax.random.PRNGKey(0)
    k_obs, k_p = jax.random.split(key)
    obs = jax.random.normal(k_obs, (B, obs_dim), jnp.float32)
    params = make_params(k_p, obs_dim, hidden_sizes)

    out = mlp_critic_forward(obs, params, activation=activation)
    out = jax.block_until_ready(out)

    ref = reference_forward(obs, params, activation=activation)
    assert out.shape == (B,)
    assert jnp.allclose(out, ref, atol=2e-3, rtol=2e-3), "Pallas output mismatch vs reference"

    print("KERNEL_OK")
</pallas_src>

<mosaic_0001>
module attributes {stable_mosaic.version = 11 : i64} {
  func.func @_mlp_critic_kernel(%arg0: i32, %arg1: memref<32x256xbf16, #tpu.memory_space<vmem>>, %arg2: memref<64x32xbf16, #tpu.memory_space<vmem>>, %arg3: memref<64x1xf32, #tpu.memory_space<vmem>>, %arg4: memref<64x64xbf16, #tpu.memory_space<vmem>>, %arg5: memref<64x1xf32, #tpu.memory_space<vmem>>, %arg6: memref<64x1xf32, #tpu.memory_space<vmem>>, %arg7: memref<1x1xf32, #tpu.memory_space<vmem>>, %arg8: memref<1x256xf32, #tpu.memory_space<vmem>>) attributes {dimension_semantics = [#tpu.dimension_semantics<parallel>], iteration_bounds = array<i64: 2>, scalar_prefetch = 0 : i64, scratch_operands = 0 : i64, tpu.core_type = #tpu.core_type<tc>, window_params = [{transform_indices = @transform_0, window_bounds = array<i64: 32, 256>}, {pipeline_mode = #tpu.pipeline_mode<synchronous>, transform_indices = @transform_1, window_bounds = array<i64: 64, 32>}, {pipeline_mode = #tpu.pipeline_mode<synchronous>, transform_indices = @transform_2, window_bounds = array<i64: 64, 1>}, {pipeline_mode = #tpu.pipeline_mode<synchronous>, transform_indices = @transform_3, window_bounds = array<i64: 64, 64>}, {pipeline_mode = #tpu.pipeline_mode<synchronous>, transform_indices = @transform_4, window_bounds = array<i64: 64, 1>}, {pipeline_mode = #tpu.pipeline_mode<synchronous>, transform_indices = @transform_5, window_bounds = array<i64: 64, 1>}, {pipeline_mode = #tpu.pipeline_mode<synchronous>, transform_indices = @transform_6, window_bounds = array<i64: 1, 1>}, {transform_indices = @transform_7, window_bounds = array<i64: 1, 256>}]} {
    %c0 = arith.constant 0 : index
    %c0_0 = arith.constant 0 : index
    %0 = vector.load %arg1[%c0, %c0_0] : memref<32x256xbf16, #tpu.memory_space<vmem>>, vector<32x256xbf16>
    %c0_1 = arith.constant 0 : index
    %c0_2 = arith.constant 0 : index
    %1 = vector.load %arg2[%c0_1, %c0_2] : memref<64x32xbf16, #tpu.memory_space<vmem>>, vector<64x32xbf16>
    %cst = arith.constant dense<0.000000e+00> : vector<64x256xf32>
    %2 = tpu.matmul %1, %0, %cst {dimension_numbers = #tpu.dot_dimension_numbers<[1], [0], [0], [1], [0, 0, 1, 1], [], []>} : vector<64x32xbf16>, vector<32x256xbf16>, vector<64x256xf32> -> vector<64x256xf32>
    %c0_3 = arith.constant 0 : index
    %c0_4 = arith.constant 0 : index
    %3 = vector.load %arg3[%c0_3, %c0_4] : memref<64x1xf32, #tpu.memory_space<vmem>>, vector<64x1xf32>
    %4 = vector.broadcast %3 : vector<64x1xf32> to vector<64x256xf32>
    %5 = arith.addf %2, %4 : vector<64x256xf32>
    %6 = math.tanh %5 : vector<64x256xf32>
    %7 = arith.truncf %6 : vector<64x256xf32> to vector<64x256xbf16>
    %c0_5 = arith.constant 0 : index
    %c0_6 = arith.constant 0 : index
    %8 = vector.load %arg4[%c0_5, %c0_6] : memref<64x64xbf16, #tpu.memory_space<vmem>>, vector<64x64xbf16>
    %cst_7 = arith.constant dense<0.000000e+00> : vector<64x256xf32>
    %9 = tpu.matmul %8, %7, %cst_7 {dimension_numbers = #tpu.dot_dimension_numbers<[1], [0], [0], [1], [0, 0, 1, 1], [], []>} : vector<64x64xbf16>, vector<64x256xbf16>, vector<64x256xf32> -> vector<64x256xf32>
    %c0_8 = arith.constant 0 : index
    %c0_9 = arith.constant 0 : index
    %10 = vector.load %arg5[%c0_8, %c0_9] : memref<64x1xf32, #tpu.memory_space<vmem>>, vector<64x1xf32>
    %11 = vector.broadcast %10 : vector<64x1xf32> to vector<64x256xf32>
    %12 = arith.addf %9, %11 : vector<64x256xf32>
    %13 = math.tanh %12 : vector<64x256xf32>
    %c0_10 = arith.constant 0 : index
    %c0_11 = arith.constant 0 : index
    %14 = vector.load %arg6[%c0_10, %c0_11] : memref<64x1xf32, #tpu.memory_space<vmem>>, vector<64x1xf32>
    %15 = vector.broadcast %14 : vector<64x1xf32> to vector<64x256xf32>
    %16 = arith.mulf %13, %15 : vector<64x256xf32>
    %cst_12 = arith.constant dense<0.000000e+00> : vector<256xf32>
    %17 = vector.multi_reduction <add>, %16, %cst_12 [0] : vector<64x256xf32> to vector<256xf32>
    %18 = vector.shape_cast %17 : vector<256xf32> to vector<1x256xf32>
    %c0_13 = arith.constant 0 : index
    %c0_14 = arith.constant 0 : index
    %19 = vector.load %arg7[%c0_13, %c0_14] : memref<1x1xf32, #tpu.memory_space<vmem>>, vector<1x1xf32>
    %20 = vector.broadcast %19 : vector<1x1xf32> to vector<1x256xf32>
    %21 = arith.addf %18, %20 : vector<1x256xf32>
    %c0_15 = arith.constant 0 : index
    %c0_16 = arith.constant 0 : index
    %22 = vector.load %arg8[%c0_15, %c0_16] : memref<1x256xf32, #tpu.memory_space<vmem>>, vector<1x256xf32>
    tpu.vector_store %arg8[%c0_15, %c0_16], %21 {strides = array<i32>} : memref<1x256xf32, #tpu.memory_space<vmem>>, vector<1x256xf32>,
    return
  }
  func.func @transform_0(%arg0: i32) -> (i32, i32) {
    %c0_i32 = arith.constant 0 : i32
    %c0_i32_0 = arith.constant 0 : i32
    return %c0_i32, %arg0 : i32, i32
  }
  func.func @transform_1(%arg0: i32) -> (i32, i32) {
    %c0_i32 = arith.constant 0 : i32
    %c0_i32_0 = arith.constant 0 : i32
    %c0_i32_1 = arith.constant 0 : i32
    return %c0_i32, %c0_i32_0 : i32, i32
  }
  func.func @transform_2(%arg0: i32) -> (i32, i32) {
    %c0_i32 = arith.constant 0 : i32
    %c0_i32_0 = arith.constant 0 : i32
    %c0_i32_1 = arith.constant 0 : i32
    return %c0_i32, %c0_i32_0 : i32, i32
  }
  func.func @transform_3(%arg0: i32) -> (i32, i32) {
    %c0_i32 = arith.constant 0 : i32
    %c0_i32_0 = arith.constant 0 : i32
    %c0_i32_1 = arith.constant 0 : i32
    return %c0_i32, %c0_i32_0 : i32, i32
  }
  func.func @transform_4(%arg0: i32) -> (i32, i32) {
    %c0_i32 = arith.constant 0 : i32
    %c0_i32_0 = arith.constant 0 : i32
    %c0_i32_1 = arith.constant 0 : i32
    return %c0_i32, %c0_i32_0 : i32, i32
  }
  func.func @transform_5(%arg0: i32) -> (i32, i32) {
    %c0_i32 = arith.constant 0 : i32
    %c0_i32_0 = arith.constant 0 : i32
    %c0_i32_1 = arith.constant 0 : i32
    return %c0_i32, %c0_i32_0 : i32, i32
  }
  func.func @transform_6(%arg0: i32) -> (i32, i32) {
    %c0_i32 = arith.constant 0 : i32
    %c0_i32_0 = arith.constant 0 : i32
    %c0_i32_1 = arith.constant 0 : i32
    return %c0_i32, %c0_i32_0 : i32, i32
  }
  func.func @transform_7(%arg0: i32) -> (i32, i32) {
    %c0_i32 = arith.constant 0 : i32
    %c0_i32_0 = arith.constant 0 : i32
    return %c0_i32, %arg0 : i32, i32
  }
}

</mosaic_0001>

<llo_original>
// kernel: tpu_custom_call.1
$region0: #{tpu_custom_call.1}
  #allocation0 [shape = 'u32[]', space=smem, size = 0x4, offset = 0x4, fixed_abs, tag = 'smem constant byte address 0x4 - core index']
  #allocation1 [shape = 'u32[144,128]{1,0:T(1,128)}', space=vmem, size = 0x12000, scoped, tag = 'internal scratch']
  #allocation2 [shape = 'f32[1,1]{1,0:T(1,128)S(1)}', space=vmem, size = 0x200, scoped, tag = 'scoped memory for tpu_custom_call.1']
  %s0 = inlined_call_operand.vmem [shape: bf16[32,512], index: 0, kind: input, shape index: {}]
  %s1 = inlined_call_operand.vmem [shape: bf16[64,32], index: 1, kind: input, shape index: {}]
  %s2 = inlined_call_operand.vmem [shape: f32[64,1], index: 2, kind: input, shape index: {}]
  %s3 = inlined_call_operand.vmem [shape: bf16[64,64], index: 3, kind: input, shape index: {}]
  %s4 = inlined_call_operand.vmem [shape: f32[64,1], index: 4, kind: input, shape index: {}]
  %s5 = inlined_call_operand.vmem [shape: f32[64,1], index: 5, kind: input, shape index: {}]
  %s6 = inlined_call_operand.<no memory space> [shape: f32[1,1], index: 6, kind: input, shape index: {}]
  %s7 = inlined_call_operand.hbm [shape: f32[1,512], index: 7, kind: output, shape index: {}]
  %s8 = sld [smem:[#allocation0]]
  $region99: #{tpu_custom_call.1} parent=0
    _
  %s10 = ssub.s32 1, %s8
  %s11 = scalar_select 0, %s10, %s8
  %v12 = vstv %s6
  %13 = vst [vmem:[#allocation2] sm:$0x1] %v12
  $region1: #{tpu_custom_call.1} parent=0
    #allocation3 [shape = 'u8[32768]{0}', space=vmem, size = 0x8000, scoped, tag = 'input window, operand 0']
    #allocation4 [shape = 'u8[2048]{0}', space=vmem, size = 0x800, scoped, tag = 'output window, operand 0']
    #allocation5 [shape = 's32[2]{0}', space=sflag, size = 0x8, scoped, tag = 'scoped memory for tpu_custom_call.1']
    %14 = vsyncpa [#allocation5], 0
    %s15 = scalar_lea.sflag [#allocation5], 1
    %16 = vsyncpa %s15, 0
    loop: start=0, step=1, limit=4
    $region2: #{tpu_custom_call.1} parent=1 // loop_pre_header
      _
    $region3: #{tpu_custom_call.1} parent=1 // loop_header
      %s18 = sphi 0, %s22
      %p19 = scmp.ge.s32.totalorder %s18, 4
      %s28 = sphi 0, %s30
      %s31 = sphi 0, %s28
      %s32 = sphi 0, %s31
      %s48 = sphi 0, %s32
      %s52 = sphi 0, %s52
      %s54 = sphi 0, %s52
      %s55 = sphi 0, %s54
      %s69 = sphi 0, %s55
      %s73 = sphi 0, %s73
      %s75 = sphi 0, %s73
      %s76 = sphi 0, %s75
      %s90 = sphi 0, %s76
      %s94 = sphi 0, %s94
      %s96 = sphi 0, %s94
      %s97 = sphi 0, %s96
      %s111 = sphi 0, %s97
      %s115 = sphi 0, %s115
      %s117 = sphi 0, %s115
      %s118 = sphi 0, %s117
      %s132 = sphi 0, %s118
      %s136 = sphi 0, %s136
      %s138 = sphi 0, %s136
      %s139 = sphi 0, %s138
      %s153 = sphi 0, %s139
      %s157 = sphi 0, %s157
      %s159 = sphi 0, %s157
      %s160 = sphi 0, %s159
      %s174 = sphi 0, %s160
      %s180 = sphi 0, %s182
      %s183 = sphi 0, %s180
      %s184 = sphi 0, %s183
      %s200 = sphi 0, %s184
    $region4: #{tpu_custom_call.1} parent=1 // loop_header_branch
      %21 = sbr.rel (%p19) target = $region8
    $region5: #{tpu_custom_call.1} parent=1 // loop_body
      %s23 = ssub.s32 %s18, 1
      %s24 = ssub.s32 %s18, 2
      %s25 = sadd.s32 %s18, 1
      %s26 = ssub.s32 %s18, %s25
      %p27 = scmp.eq.s32.totalorder %s26, 0
      %s29 = sadd.s32 %s28, 1
      %s30 = scalar_select %p27, %s28, %s29
      %p33 = pneg %p27
      %p34 = scmp.eq.s32.totalorder %s18, 1
      %p35 = por %p33, %p34
      %p36 = scmp.ne.s32.totalorder %s28, %s31
      %p37 = scmp.eq.s32.totalorder %s18, 0
      %p38 = por %p36, %p37
      %p39 = scmp.ne.s32.totalorder %s28, %s31
      %p40 = scmp.eq.s32.totalorder %s23, 1
      %p41 = por %p39, %p40
      %p42 = scmp.ne.s32.totalorder %s31, %s32
      %p43 = scmp.eq.s32.totalorder %s23, 0
      %p44 = por %p42, %p43
      %p45 = scmp.ne.s32.totalorder %s31, %s32
      %p46 = scmp.eq.s32.totalorder %s24, 1
      %p47 = por %p45, %p46
      %p49 = scmp.ne.s32.totalorder %s32, %s48
      %p50 = scmp.eq.s32.totalorder %s24, 0
      %p51 = por %p49, %p50
      %s53 = sadd.s32 %s52, 1
      %p56 = scmp.eq.s32.totalorder %s18, 1
      %p57 = scmp.ne.s32.totalorder %s52, %s54
      %p58 = scmp.eq.s32.totalorder %s18, 0
      %p59 = por %p57, %p58
      %p60 = scmp.ne.s32.totalorder %s52, %s54
      %p61 = scmp.eq.s32.totalorder %s23, 1
      %p62 = por %p60, %p61
      %p63 = scmp.ne.s32.totalorder %s54, %s55
      %p64 = scmp.eq.s32.totalorder %s23, 0
      %p65 = por %p63, %p64
      %p66 = scmp.ne.s32.totalorder %s54, %s55
      %p67 = scmp.eq.s32.totalorder %s24, 1
      %p68 = por %p66, %p67
      %p70 = scmp.ne.s32.totalorder %s55, %s69
      %p71 = scmp.eq.s32.totalorder %s24, 0
      %p72 = por %p70, %p71
      %s74 = sadd.s32 %s73, 1
      %p77 = scmp.eq.s32.totalorder %s18, 1
      %p78 = scmp.ne.s32.totalorder %s73, %s75
      %p79 = scmp.eq.s32.totalorder %s18, 0
      %p80 = por %p78, %p79
      %p81 = scmp.ne.s32.totalorder %s73, %s75
      %p82 = scmp.eq.s32.totalorder %s23, 1
      %p83 = por %p81, %p82
      %p84 = scmp.ne.s32.totalorder %s75, %s76
      %p85 = scmp.eq.s32.totalorder %s23, 0
      %p86 = por %p84, %p85
      %p87 = scmp.ne.s32.totalorder %s75, %s76
      %p88 = scmp.eq.s32.totalorder %s24, 1
      %p89 = por %p87, %p88
      %p91 = scmp.ne.s32.totalorder %s76, %s90
      %p92 = scmp.eq.s32.totalorder %s24, 0
      %p93 = por %p91, %p92
      %s95 = sadd.s32 %s94, 1
      %p98 = scmp.eq.s32.totalorder %s18, 1
      %p99 = scmp.ne.s32.totalorder %s94, %s96
      %p100 = scmp.eq.s32.totalorder %s18, 0
      %p101 = por %p99, %p100
      %p102 = scmp.ne.s32.totalorder %s94, %s96
      %p103 = scmp.eq.s32.totalorder %s23, 1
      %p104 = por %p102, %p103
      %p105 = scmp.ne.s32.totalorder %s96, %s97
      %p106 = scmp.eq.s32.totalorder %s23, 0
      %p107 = por %p105, %p106
      %p108 = scmp.ne.s32.totalorder %s96, %s97
      %p109 = scmp.eq.s32.totalorder %s24, 1
      %p110 = por %p108, %p109
      %p112 = scmp.ne.s32.totalorder %s97, %s111
      %p113 = scmp.eq.s32.totalorder %s24, 0
      %p114 = por %p112, %p113
      %s116 = sadd.s32 %s115, 1
      %p119 = scmp.eq.s32.totalorder %s18, 1
      %p120 = scmp.ne.s32.totalorder %s115, %s117
      %p121 = scmp.eq.s32.totalorder %s18, 0
      %p122 = por %p120, %p121
      %p123 = scmp.ne.s32.totalorder %s115, %s117
      %p124 = scmp.eq.s32.totalorder %s23, 1
      %p125 = por %p123, %p124
      %p126 = scmp.ne.s32.totalorder %s117, %s118
      %p127 = scmp.eq.s32.totalorder %s23, 0
      %p128 = por %p126, %p127
      %p129 = scmp.ne.s32.totalorder %s117, %s118
      %p130 = scmp.eq.s32.totalorder %s24, 1
      %p131 = por %p129, %p130
      %p133 = scmp.ne.s32.totalorder %s118, %s132
      %p134 = scmp.eq.s32.totalorder %s24, 0
      %p135 = por %p133, %p134
      %s137 = sadd.s32 %s136, 1
      %p140 = scmp.eq.s32.totalorder %s18, 1
      %p141 = scmp.ne.s32.totalorder %s136, %s138
      %p142 = scmp.eq.s32.totalorder %s18, 0
      %p143 = por %p141, %p142
      %p144 = scmp.ne.s32.totalorder %s136, %s138
      %p145 = scmp.eq.s32.totalorder %s23, 1
      %p146 = por %p144, %p145
      %p147 = scmp.ne.s32.totalorder %s138, %s139
      %p148 = scmp.eq.s32.totalorder %s23, 0
      %p149 = por %p147, %p148
      %p150 = scmp.ne.s32.totalorder %s138, %s139
      %p151 = scmp.eq.s32.totalorder %s24, 1
      %p152 = por %p150, %p151
      %p154 = scmp.ne.s32.totalorder %s139, %s153
      %p155 = scmp.eq.s32.totalorder %s24, 0
      %p156 = por %p154, %p155
      %s158 = sadd.s32 %s157, 1
      %p161 = scmp.eq.s32.totalorder %s18, 1
      %p162 = scmp.ne.s32.totalorder %s157, %s159
      %p163 = scmp.eq.s32.totalorder %s18, 0
      %p164 = por %p162, %p163
      %p165 = scmp.ne.s32.totalorder %s157, %s159
      %p166 = scmp.eq.s32.totalorder %s23, 1
      %p167 = por %p165, %p166
      %p168 = scmp.ne.s32.totalorder %s159, %s160
      %p169 = scmp.eq.s32.totalorder %s23, 0
      %p170 = por %p168, %p169
      %p171 = scmp.ne.s32.totalorder %s159, %s160
      %p172 = scmp.eq.s32.totalorder %s24, 1
      %p173 = por %p171, %p172
      %p175 = scmp.ne.s32.totalorder %s160, %s174
      %p176 = scmp.eq.s32.totalorder %s24, 0
      %p177 = por %p175, %p176
      %s178 = ssub.s32 %s18, %s25
      %p179 = scmp.eq.s32.totalorder %s178, 0
      %s181 = sadd.s32 %s180, 1
      %s182 = scalar_select %p179, %s180, %s181
      %p185 = pneg %p179
      %p186 = scmp.eq.s32.totalorder %s18, 1
      %p187 = por %p185, %p186
      %p188 = scmp.ne.s32.totalorder %s180, %s183
      %p189 = scmp.eq.s32.totalorder %s18, 0
      %p190 = por %p188, %p189
      %p191 = scmp.ne.s32.totalorder %s180, %s183
      %p192 = scmp.eq.s32.totalorder %s23, 1
      %p193 = por %p191, %p192
      %p194 = scmp.ne.s32.totalorder %s183, %s184
      %p195 = scmp.eq.s32.totalorder %s23, 0
      %p196 = por %p194, %p195
      %p197 = scmp.ne.s32.totalorder %s183, %s184
      %p198 = scmp.eq.s32.totalorder %s24, 1
      %p199 = por %p197, %p198
      %p201 = scmp.ne.s32.totalorder %s184, %s200
      %p202 = scmp.eq.s32.totalorder %s24, 0
      %p203 = por %p201, %p202
      %p204 = scmp.le.s32.totalorder 1, %s18
      %p205 = scmp.lt.s32.totalorder %s18, 3
      %p206 = pnand %p204, %p205
      %p207 = pneg %p206
      // Predicated region
      $region9: #{tpu_custom_call.1} parent=5 // pred_check
        _
      $region10: #{tpu_custom_call.1} parent=5 // pred_check_branch
        %209 = sbr.rel (%p206) target = $region12
      $region11: #{tpu_custom_call.1} parent=5 // pred_region
        %s210 = ssub.s32 %s18, 1
        // Predicated region
        $region13: #{tpu_custom_call.1} parent=11 // pred_check
          %p211 = pneg %p65
        $region14: #{tpu_custom_call.1} parent=11 // pred_check_branch
          %213 = sbr.rel (%p211) target = $region16
        $region15: #{tpu_custom_call.1} parent=11 // pred_region
          _
        $region16: #{tpu_custom_call.1} parent=11 // pred_fallthru
          _
        // Predicated region
        $region17: #{tpu_custom_call.1} parent=11 // pred_check
          %p214 = pneg %p86
        $region18: #{tpu_custom_call.1} parent=11 // pred_check_branch
          %216 = sbr.rel (%p214) target = $region20
        $region19: #{tpu_custom_call.1} parent=11 // pred_region
          _
        $region20: #{tpu_custom_call.1} parent=11 // pred_fallthru
          _
        // Predicated region
        $region21: #{tpu_custom_call.1} parent=11 // pred_check
          %p217 = pneg %p107
        $region22: #{tpu_custom_call.1} parent=11 // pred_check_branch
          %219 = sbr.rel (%p217) target = $region24
        $region23: #{tpu_custom_call.1} parent=11 // pred_region
          _
        $region24: #{tpu_custom_call.1} parent=11 // pred_fallthru
          _
        // Predicated region
        $region25: #{tpu_custom_call.1} parent=11 // pred_check
          %p220 = pneg %p128
        $region26: #{tpu_custom_call.1} parent=11 // pred_check_branch
          %222 = sbr.rel (%p220) target = $region28
        $region27: #{tpu_custom_call.1} parent=11 // pred_region
          _
        $region28: #{tpu_custom_call.1} parent=11 // pred_fallthru
          _
        // Predicated region
        $region29: #{tpu_custom_call.1} parent=11 // pred_check
          %p223 = pneg %p149
        $region30: #{tpu_custom_call.1} parent=11 // pred_check_branch
          %225 = sbr.rel (%p223) target = $region32
        $region31: #{tpu_custom_call.1} parent=11 // pred_region
          _
        $region32: #{tpu_custom_call.1} parent=11 // pred_fallthru
          _
        // Predicated region
        $region33: #{tpu_custom_call.1} parent=11 // pred_check
          %p226 = pneg %p170
        $region34: #{tpu_custom_call.1} parent=11 // pred_check_branch
          %228 = sbr.rel (%p226) target = $region36
        $region35: #{tpu_custom_call.1} parent=11 // pred_region
          _
        $region36: #{tpu_custom_call.1} parent=11 // pred_fallthru
          _
      $region12: #{tpu_custom_call.1} parent=5 // pred_fallthru
        _
      %p229 = scmp.lt.s32.totalorder %s18, 2
      // Predicated region
      $region37: #{tpu_custom_call.1} parent=5 // pred_check
        %p230 = pneg %p229
      $region38: #{tpu_custom_call.1} parent=5 // pred_check_branch
        %232 = sbr.rel (%p230) target = $region40
      $region39: #{tpu_custom_call.1} parent=5 // pred_region
        // Predicated region
        $region41: #{tpu_custom_call.1} parent=39 // pred_check
          %p233 = pneg %p38
        $region42: #{tpu_custom_call.1} parent=39 // pred_check_branch
          %235 = sbr.rel (%p233) target = $region44
        $region43: #{tpu_custom_call.1} parent=39 // pred_region
          %s236 = sand.u32 %s28, 1
          %s237 = sand.u32 %s28, 1
          %s238 = smul.addr %s237, 32
          %s239 = scalar_lea.vmem [#allocation3], %s238
          %s240 = smul.u32 2, %s18
          %s241 = smul.addr %s240, 4
          %s242 = scalar_lea.vmem %s0, %s241
          // Predicated region
          $region45: #{tpu_custom_call.1} parent=43 // pred_check
            _
          $region46: #{tpu_custom_call.1} parent=43 // pred_check_branch
            %244 = sbr.rel (0) target = $region48
          $region47: #{tpu_custom_call.1} parent=43 // pred_region
            // Predicated region
            $region49: #{tpu_custom_call.1} parent=47 // pred_check
              _
            $region50: #{tpu_custom_call.1} parent=47 // pred_check_branch
              %246 = sbr.rel (0) target = $region52
            $region51: #{tpu_custom_call.1} parent=47 // pred_region
              // Predicated region
              $region64: #{tpu_custom_call.1} parent=51 // pred_check
                _
              $region65: #{tpu_custom_call.1} parent=51 // pred_check_branch
                %268 = sbr.rel (0) target = $region67
              $region66: #{tpu_custom_call.1} parent=51 // pred_region
                loop: start=0, step=1, limit=1
                $region68: #{tpu_custom_call.1} parent=66 // loop_pre_header
                  _
                $region69: #{tpu_custom_call.1} parent=66 // loop_header
                  %s270 = sphi 0, %s274
                  %p271 = scmp.ge.s32.totalorder %s270, 1
                  %s275 = sphi %s242, %s242
                  %s276 = sphi %s239, %s239
                $region70: #{tpu_custom_call.1} parent=66 // loop_header_branch
                  %273 = sbr.rel (%p271) target = $region74
                $region71: #{tpu_custom_call.1} parent=66 // loop_body
                  %v277 = vld [vmem:[%s275] sm:$0xff]
                  %278 = vst [vmem:[%s276] sm:$0xff] %v277
                  %v279 = vld [vmem:[%s275 + $0x10] sm:$0xff]
                  %280 = vst [vmem:[%s276 + $0x8] sm:$0xff] %v279
                  %v281 = vld [vmem:[%s275 + $0x20] sm:$0xff]
                  %282 = vst [vmem:[%s276 + $0x10] sm:$0xff] %v281
                  %v283 = vld [vmem:[%s275 + $0x30] sm:$0xff]
                  %284 = vst [vmem:[%s276 + $0x18] sm:$0xff] %v283
                $region72: #{tpu_custom_call.1} parent=66 // loop_footer
                  %s274 = sadd.s32 1, %s270
                $region73: #{tpu_custom_call.1} parent=66 // loop_footer_branch
                  %269 = sbr.rel target = $region69
                $region74: #{tpu_custom_call.1} parent=66 // loop_exit
                  _
              $region67: #{tpu_custom_call.1} parent=51 // pred_fallthru
                _
              // Predicated region
              $region75: #{tpu_custom_call.1} parent=51 // pred_check
                _
              $region76: #{tpu_custom_call.1} parent=51 // pred_check_branch
                %286 = sbr.rel target = $region78
              $region77: #{tpu_custom_call.1} parent=51 // pred_region
                _
              $region78: #{tpu_custom_call.1} parent=51 // pred_fallthru
                _
            $region52: #{tpu_custom_call.1} parent=47 // pred_fallthru
              _
            // Predicated region
            $region53: #{tpu_custom_call.1} parent=47 // pred_check
              _
            $region54: #{tpu_custom_call.1} parent=47 // pred_check_branch
              %248 = sbr.rel target = $region56
            $region55: #{tpu_custom_call.1} parent=47 // pred_region
              %s250 = ssub.s32 256, 1
              loop: start=0, step=1, limit=1
              $region57: #{tpu_custom_call.1} parent=55 // loop_pre_header
                _
              $region58: #{tpu_custom_call.1} parent=55 // loop_header
                %s252 = sphi 0, %s256
                %p253 = scmp.ge.s32.totalorder %s252, 1
                %s257 = sphi %s242, %s242
                %s258 = sphi %s239, %s239
              $region59: #{tpu_custom_call.1} parent=55 // loop_header_branch
                %255 = sbr.rel (%p253) target = $region63
              $region60: #{tpu_custom_call.1} parent=55 // loop_body
                %v259 = vld [vmem:[%s257] sm:%s250]
                %260 = vst [vmem:[%s258] sm:%s250] %v259
                %v261 = vld [vmem:[%s257 + $0x10] sm:%s250]
                %262 = vst [vmem:[%s258 + $0x8] sm:%s250] %v261
                %v263 = vld [vmem:[%s257 + $0x20] sm:%s250]
                %264 = vst [vmem:[%s258 + $0x10] sm:%s250] %v263
                %v265 = vld [vmem:[%s257 + $0x30] sm:%s250]
                %266 = vst [vmem:[%s258 + $0x18] sm:%s250] %v265
              $region61: #{tpu_custom_call.1} parent=55 // loop_footer
                %s256 = sadd.s32 1, %s252
              $region62: #{tpu_custom_call.1} parent=55 // loop_footer_branch
                %251 = sbr.rel target = $region58
              $region63: #{tpu_custom_call.1} parent=55 // loop_exit
                _
            $region56: #{tpu_custom_call.1} parent=47 // pred_fallthru
              _
          $region48: #{tpu_custom_call.1} parent=43 // pred_fallthru
            _
          %287 = vnop
        $region44: #{tpu_custom_call.1} parent=39 // pred_fallthru
          _
      $region40: #{tpu_custom_call.1} parent=5 // pred_fallthru
        _
      %p288 = scmp.le.s32.totalorder 1, %s18
      %p289 = scmp.lt.s32.totalorder %s18, 3
      %p290 = pnand %p288, %p289
      %p291 = pneg %p290
      // Predicated region
      $region79: #{tpu_custom_call.1} parent=5 // pred_check
        _
      $region80: #{tpu_custom_call.1} parent=5 // pred_check_branch
        %293 = sbr.rel (%p290) target = $region82
      $region81: #{tpu_custom_call.1} parent=5 // pred_region
        %s294 = ssub.s32 %s18, 1
        %s295 = sand.u32 %s31, 1
        %s296 = sand.u32 %s31, 1
        %s297 = smul.addr %s296, 32
        %s298 = scalar_lea.vmem [#allocation3], %s297
        // Predicated region
        $region83: #{tpu_custom_call.1} parent=81 // pred_check
          %p299 = pneg %p44
        $region84: #{tpu_custom_call.1} parent=81 // pred_check_branch
          %301 = sbr.rel (%p299) target = $region86
        $region85: #{tpu_custom_call.1} parent=81 // pred_region
          _
        $region86: #{tpu_custom_call.1} parent=81 // pred_fallthru
          _
        %s302 = sand.u32 %s31, 1
        %s303 = sand.u32 %s31, 1
        %s304 = smul.addr %s303, 32
        %s305 = scalar_lea.vmem [#allocation3], %s304
        %p306 = pneg %p44
        %p307 = pneg %p41
        %p308 = pneg %p65
        %p309 = pneg %p62
        %p310 = pneg %p86
        %p311 = pneg %p83
        %p312 = pneg %p107
        %p313 = pneg %p104
        %p314 = pneg %p128
        %p315 = pneg %p125
        %p316 = pneg %p149
        %p317 = pneg %p146
        %p318 = pneg %p170
        %p319 = pneg %p167
        %p320 = pneg %p196
        %p321 = pneg %p193
        %s322 = sand.u32 %s183, 1
        %s323 = scalar_lea.sflag [#allocation5], %s322
        %s324 = sand.u32 %s183, 1
        %s325 = smul.addr %s324, 2
        %s326 = scalar_lea.vmem [#allocation4], %s325
        %s327 = smul.u32 2, %s23
        %s328 = smul.u32 2, %s23
        %v330 = vld [vmem:[%s298] sm:$0xff]
        %v331 = vld [vmem:[%s298 + $0x8] sm:$0xff]
        %v332 = vld [vmem:[%s298 + $0x10] sm:$0xff]
        %v333 = vld [vmem:[%s298 + $0x18] sm:$0xff]
        %v334 = vld [vmem:[%s1] sm:$0xf]
        %v335 = vld [vmem:[%s1 + $0x4] sm:$0xf]
        %v336 = vld [vmem:[%s1 + $0x8] sm:$0xf]
        %v337 = vld [vmem:[%s1 + $0xc] sm:$0xf]
        %v338 = vld [vmem:[%s1 + $0x10] sm:$0xf]
        %v339 = vld [vmem:[%s1 + $0x14] sm:$0xf]
        %v340 = vld [vmem:[%s1 + $0x18] sm:$0xf]
        %v341 = vld [vmem:[%s1 + $0x1c] sm:$0xf]
        %v342 = vld [vmem:[%s2] sm:$0xff]
        %v343 = vld [vmem:[%s2 + $0x8] sm:$0xff]
        %v344 = vld [vmem:[%s2 + $0x10] sm:$0xff]
        %v345 = vld [vmem:[%s2 + $0x18] sm:$0xff]
        %v346 = vld [vmem:[%s2 + $0x20] sm:$0xff]
        %v347 = vld [vmem:[%s2 + $0x28] sm:$0xff]
        %v348 = vld [vmem:[%s2 + $0x30] sm:$0xff]
        %v349 = vld [vmem:[%s2 + $0x38] sm:$0xff]
        %351 = vset.pattern.permute.xlu0 0
        %352 = vperm.xlu0 %351, %v342
        %v353 = vpop.permute.xlu0 %352
        %356 = vset.pattern.permute.xlu0 0
        %357 = vperm.xlu0 %356, %v343
        %v358 = vpop.permute.xlu0 %357
        %361 = vset.pattern.permute.xlu0 0
        %362 = vperm.xlu0 %361, %v344
        %v363 = vpop.permute.xlu0 %362
        %366 = vset.pattern.permute.xlu0 0
        %367 = vperm.xlu0 %366, %v345
        %v368 = vpop.permute.xlu0 %367
        %371 = vset.pattern.permute.xlu0 0
        %372 = vperm.xlu0 %371, %v346
        %v373 = vpop.permute.xlu0 %372
        %376 = vset.pattern.permute.xlu0 0
        %377 = vperm.xlu0 %376, %v347
        %v378 = vpop.permute.xlu0 %377
        %381 = vset.pattern.permute.xlu0 0
        %382 = vperm.xlu0 %381, %v348
        %v383 = vpop.permute.xlu0 %382
        %386 = vset.pattern.permute.xlu0 0
        %387 = vperm.xlu0 %386, %v349
        %v388 = vpop.permute.xlu0 %387
        %v398 = vunpack.c.l.b16 %v334
        %v399 = vunpack.c.l.b16 %v335
        %v400 = vunpack.c.l.b16 %v336
        %v401 = vunpack.c.l.b16 %v337
        %v402 = vunpack.c.l.b16 %v338
        %v403 = vunpack.c.l.b16 %v339
        %v404 = vunpack.c.l.b16 %v340
        %v405 = vunpack.c.l.b16 %v341
        %v406 = vpack.c.b16 %v399, %v398
        %v407 = vpack.c.b16 %v401, %v400
        %v408 = vpack.c.b16 %v403, %v402
        %v409 = vpack.c.b16 %v405, %v404
        %v414 = vunpack.c.l.b16 %v330
        %v415 = vunpack.c.h.b16 %v330
        %v416 = vunpack.c.l.b16 %v331
        %v417 = vunpack.c.h.b16 %v331
        %v418 = vunpack.c.l.b16 %v332
        %v419 = vunpack.c.h.b16 %v332
        %v420 = vunpack.c.l.b16 %v333
        %v421 = vunpack.c.h.b16 %v333
        %v422 = vpack.c.b16 %v416, %v414
        %v423 = vpack.c.b16 %v417, %v415
        %v424 = vpack.c.b16 %v420, %v418
        %v425 = vpack.c.b16 %v421, %v419
        %vm430 = vcmask 261120
        %v432 = vsel %vm430, %v406, 0
        %v435 = vsel %vm430, %v407, 0
        %v438 = vsel %vm430, %v408, 0
        %v441 = vsel %vm430, %v409, 0
        %443 = vmatprep.subr.bf16.mxu0 0
        %444 = vmatpush1.bf16.msra.mxu0 0
        %445 = vmatprep.subr.bf16.mxu0 0
        %446 = vmatpush1.bf16.msra.mxu0 0
        %447 = vmatprep.subr.bf16.mxu0 0
        %448 = vmatpush1.bf16.msra.mxu0 0
        %449 = vmatprep.subr.bf16.mxu0 0
        %450 = vmatpush1.bf16.msra.mxu0 0
        %451 = vmatprep.subr.bf16.mxu0 0
        %452 = vmatpush1.bf16.msra.mxu0 0
        %453 = vmatprep.subr.bf16.mxu0 0
        %454 = vmatpush1.bf16.msra.mxu0 0
        %455 = vmatprep.subr.bf16.mxu0 %v425
        %456 = vmatpush1.bf16.msra.mxu0 %v424
        %457 = vmatprep.subr.bf16.mxu0 %v423
        %458 = vmatpush1.bf16.msra.mxu0 %v422
        %459 = vmatprep.subr.bf16.mxu0 0
        %460 = vmatpush2.bf16.msra.mxu0 0
        %461 = vmatprep.subr.bf16.mxu0 0
        %462 = vmatpush2.bf16.msra.mxu0 0
        %463 = vmatprep.subr.bf16.mxu0 0
        %464 = vmatpush2.bf16.msra.mxu0 0
        %465 = vmatprep.subr.bf16.mxu0 0
        %466 = vmatpush2.bf16.msra.mxu0 0
        %467 = vmatprep.subr.bf16.mxu0 0
        %468 = vmatpush2.bf16.msra.mxu0 0
        %469 = vmatprep.subr.bf16.mxu0 0
        %470 = vmatpush2.bf16.msra.mxu0 0
        %471 = vmatprep.subr.bf16.mxu0 0
        %472 = vmatpush2.bf16.msra.mxu0 0
        %473 = vmatprep.subr.bf16.mxu0 0
        %474 = vmatpush2.bf16.msra.mxu0 0
        %475 = vmatprep.mubr.bf16.mxu0 0
        %476 = vmatmul.mubr.bf16.gmra.mxu0 %v432
        %v477 = vpop.f32.mrf.mxu0
        %v478 = vadd.f32 %v353, %v477
        %v479 = vpop.f32.mrf.mxu0
        %v480 = vadd.f32 %v353, %v479
        %v481 = vpop.f32.mrf.mxu0
        %v482 = vadd.f32 %v358, %v481
        %v483 = vpop.f32.mrf.mxu0
        %v484 = vadd.f32 %v358, %v483
        %485 = vmatprep.mubr.bf16.mxu0 0
        %486 = vmatmul.mubr.bf16.gmra.mxu0 %v435
        %v487 = vpop.f32.mrf.mxu0
        %v488 = vadd.f32 %v363, %v487
        %v489 = vpop.f32.mrf.mxu0
        %v490 = vadd.f32 %v363, %v489
        %v491 = vpop.f32.mrf.mxu0
        %v492 = vadd.f32 %v368, %v491
        %v493 = vpop.f32.mrf.mxu0
        %v494 = vadd.f32 %v368, %v493
        %495 = vmatprep.mubr.bf16.mxu0 0
        %496 = vmatmul.mubr.bf16.gmra.mxu0 %v438
        %v497 = vpop.f32.mrf.mxu0
        %v498 = vadd.f32 %v373, %v497
        %v499 = vpop.f32.mrf.mxu0
        %v500 = vadd.f32 %v373, %v499
        %v501 = vpop.f32.mrf.mxu0
        %v502 = vadd.f32 %v378, %v501
        %v503 = vpop.f32.mrf.mxu0
        %v504 = vadd.f32 %v378, %v503
        %505 = vmatprep.mubr.bf16.mxu0 0
        %506 = vmatmul.mubr.bf16.gmra.mxu0 %v441
        %v507 = vpop.f32.mrf.mxu0
        %v508 = vadd.f32 %v383, %v507
        %v509 = vpop.f32.mrf.mxu0
        %v510 = vadd.f32 %v383, %v509
        %v511 = vpop.f32.mrf.mxu0
        %v512 = vadd.f32 %v388, %v511
        %v513 = vpop.f32.mrf.mxu0
        %v514 = vadd.f32 %v388, %v513
        %515 = vdwg.mxu0
        %v516 = vtanh.pop %v478
        %v517 = vtanh.pop %v480
        %v518 = vtanh.pop %v482
        %v519 = vtanh.pop %v484
        %v520 = vtanh.pop %v488
        %v521 = vtanh.pop %v490
        %v522 = vtanh.pop %v492
        %v523 = vtanh.pop %v494
        %v524 = vtanh.pop %v498
        %v525 = vtanh.pop %v500
        %v526 = vtanh.pop %v502
        %v527 = vtanh.pop %v504
        %v528 = vtanh.pop %v508
        %v529 = vtanh.pop %v510
        %v530 = vtanh.pop %v512
        %v531 = vtanh.pop %v514
        %v532 = vpack.c.bf16 %v518, %v516
        %v533 = vpack.c.bf16 %v519, %v517
        %v534 = vpack.c.bf16 %v522, %v520
        %v535 = vpack.c.bf16 %v523, %v521
        %v536 = vpack.c.bf16 %v526, %v524
        %v537 = vpack.c.bf16 %v527, %v525
        %v538 = vpack.c.bf16 %v530, %v528
        %v539 = vpack.c.bf16 %v531, %v529
        %v540 = vld [vmem:[%s3] sm:$0xf]
        %v541 = vld [vmem:[%s3 + $0x4] sm:$0xf]
        %v542 = vld [vmem:[%s3 + $0x8] sm:$0xf]
        %v543 = vld [vmem:[%s3 + $0xc] sm:$0xf]
        %v544 = vld [vmem:[%s3 + $0x10] sm:$0xf]
        %v545 = vld [vmem:[%s3 + $0x14] sm:$0xf]
        %v546 = vld [vmem:[%s3 + $0x18] sm:$0xf]
        %v547 = vld [vmem:[%s3 + $0x1c] sm:$0xf]
        %v548 = vld [vmem:[%s4] sm:$0xff]
        %v549 = vld [vmem:[%s4 + $0x8] sm:$0xff]
        %v550 = vld [vmem:[%s4 + $0x10] sm:$0xff]
        %v551 = vld [vmem:[%s4 + $0x18] sm:$0xff]
        %v552 = vld [vmem:[%s4 + $0x20] sm:$0xff]
        %v553 = vld [vmem:[%s4 + $0x28] sm:$0xff]
        %v554 = vld [vmem:[%s4 + $0x30] sm:$0xff]
        %v555 = vld [vmem:[%s4 + $0x38] sm:$0xff]
        %557 = vset.pattern.permute.xlu0 0
        %558 = vperm.xlu0 %557, %v548
        %v559 = vpop.permute.xlu0 %558
        %562 = vset.pattern.permute.xlu0 0
        %563 = vperm.xlu0 %562, %v549
        %v564 = vpop.permute.xlu0 %563
        %567 = vset.pattern.permute.xlu0 0
        %568 = vperm.xlu0 %567, %v550
        %v569 = vpop.permute.xlu0 %568
        %572 = vset.pattern.permute.xlu0 0
        %573 = vperm.xlu0 %572, %v551
        %v574 = vpop.permute.xlu0 %573
        %577 = vset.pattern.permute.xlu0 0
        %578 = vperm.xlu0 %577, %v552
        %v579 = vpop.permute.xlu0 %578
        %582 = vset.pattern.permute.xlu0 0
        %583 = vperm.xlu0 %582, %v553
        %v584 = vpop.permute.xlu0 %583
        %587 = vset.pattern.permute.xlu0 0
        %588 = vperm.xlu0 %587, %v554
        %v589 = vpop.permute.xlu0 %588
        %592 = vset.pattern.permute.xlu0 0
        %593 = vperm.xlu0 %592, %v555
        %v594 = vpop.permute.xlu0 %593
        %v604 = vunpack.c.l.b16 %v540
        %v605 = vunpack.c.l.b16 %v541
        %v606 = vunpack.c.l.b16 %v542
        %v607 = vunpack.c.l.b16 %v543
        %v608 = vunpack.c.l.b16 %v544
        %v609 = vunpack.c.l.b16 %v545
        %v610 = vunpack.c.l.b16 %v546
        %v611 = vunpack.c.l.b16 %v547
        %v612 = vpack.c.b16 %v605, %v604
        %v613 = vpack.c.b16 %v607, %v606
        %v614 = vpack.c.b16 %v609, %v608
        %v615 = vpack.c.b16 %v611, %v610
        %vm616 = vcmask 523264
        %v618 = vsel %vm616, %v612, 0
        %v621 = vsel %vm616, %v613, 0
        %v624 = vsel %vm616, %v614, 0
        %v627 = vsel %vm616, %v615, 0
        %629 = vmatprep.subr.bf16.mxu0 0
        %630 = vmatpush1.bf16.msra.mxu0 0
        %631 = vmatprep.subr.bf16.mxu0 0
        %632 = vmatpush1.bf16.msra.mxu0 0
        %633 = vmatprep.subr.bf16.mxu0 0
        %634 = vmatpush1.bf16.msra.mxu0 0
        %635 = vmatprep.subr.bf16.mxu0 0
        %636 = vmatpush1.bf16.msra.mxu0 0
        %637 = vmatprep.subr.bf16.mxu0 %v539
        %638 = vmatpush1.bf16.msra.mxu0 %v538
        %639 = vmatprep.subr.bf16.mxu0 %v537
        %640 = vmatpush1.bf16.msra.mxu0 %v536
        %641 = vmatprep.subr.bf16.mxu0 %v535
        %642 = vmatpush1.bf16.msra.mxu0 %v534
        %643 = vmatprep.subr.bf16.mxu0 %v533
        %644 = vmatpush1.bf16.msra.mxu0 %v532
        %645 = vmatprep.subr.bf16.mxu0 0
        %646 = vmatpush2.bf16.msra.mxu0 0
        %647 = vmatprep.subr.bf16.mxu0 0
        %648 = vmatpush2.bf16.msra.mxu0 0
        %649 = vmatprep.subr.bf16.mxu0 0
        %650 = vmatpush2.bf16.msra.mxu0 0
        %651 = vmatprep.subr.bf16.mxu0 0
        %652 = vmatpush2.bf16.msra.mxu0 0
        %653 = vmatprep.subr.bf16.mxu0 0
        %654 = vmatpush2.bf16.msra.mxu0 0
        %655 = vmatprep.subr.bf16.mxu0 0
        %656 = vmatpush2.bf16.msra.mxu0 0
        %657 = vmatprep.subr.bf16.mxu0 0
        %658 = vmatpush2.bf16.msra.mxu0 0
        %659 = vmatprep.subr.bf16.mxu0 0
        %660 = vmatpush2.bf16.msra.mxu0 0
        %661 = vmatprep.mubr.bf16.mxu0 0
        %662 = vmatmul.mubr.bf16.gmra.mxu0 %v618
        %v663 = vpop.f32.mrf.mxu0
        %v664 = vadd.f32 %v559, %v663
        %v665 = vpop.f32.mrf.mxu0
        %v666 = vadd.f32 %v559, %v665
        %v667 = vpop.f32.mrf.mxu0
        %v668 = vadd.f32 %v564, %v667
        %v669 = vpop.f32.mrf.mxu0
        %v670 = vadd.f32 %v564, %v669
        %671 = vmatprep.mubr.bf16.mxu0 0
        %672 = vmatmul.mubr.bf16.gmra.mxu0 %v621
        %v673 = vpop.f32.mrf.mxu0
        %v674 = vadd.f32 %v569, %v673
        %v675 = vpop.f32.mrf.mxu0
        %v676 = vadd.f32 %v569, %v675
        %v677 = vpop.f32.mrf.mxu0
        %v678 = vadd.f32 %v574, %v677
        %v679 = vpop.f32.mrf.mxu0
        %v680 = vadd.f32 %v574, %v679
        %681 = vmatprep.mubr.bf16.mxu0 0
        %682 = vmatmul.mubr.bf16.gmra.mxu0 %v624
        %v683 = vpop.f32.mrf.mxu0
        %v684 = vadd.f32 %v579, %v683
        %v685 = vpop.f32.mrf.mxu0
        %v686 = vadd.f32 %v579, %v685
        %v687 = vpop.f32.mrf.mxu0
        %v688 = vadd.f32 %v584, %v687
        %v689 = vpop.f32.mrf.mxu0
        %v690 = vadd.f32 %v584, %v689
        %691 = vmatprep.mubr.bf16.mxu0 0
        %692 = vmatmul.mubr.bf16.gmra.mxu0 %v627
        %v693 = vpop.f32.mrf.mxu0
        %v694 = vadd.f32 %v589, %v693
        %v695 = vpop.f32.mrf.mxu0
        %v696 = vadd.f32 %v589, %v695
        %v697 = vpop.f32.mrf.mxu0
        %v698 = vadd.f32 %v594, %v697
        %v699 = vpop.f32.mrf.mxu0
        %v700 = vadd.f32 %v594, %v699
        %701 = vdwg.mxu0
        %v702 = vtanh.pop %v664
        %v703 = vtanh.pop %v666
        %v704 = vtanh.pop %v668
        %v705 = vtanh.pop %v670
        %v706 = vtanh.pop %v674
        %v707 = vtanh.pop %v676
        %v708 = vtanh.pop %v678
        %v709 = vtanh.pop %v680
        %v710 = vtanh.pop %v684
        %v711 = vtanh.pop %v686
        %v712 = vtanh.pop %v688
        %v713 = vtanh.pop %v690
        %v714 = vtanh.pop %v694
        %v715 = vtanh.pop %v696
        %v716 = vtanh.pop %v698
        %v717 = vtanh.pop %v700
        %v718 = vld [vmem:[%s5] sm:$0xff]
        %v719 = vld [vmem:[%s5 + $0x8] sm:$0xff]
        %v720 = vld [vmem:[%s5 + $0x10] sm:$0xff]
        %v721 = vld [vmem:[%s5 + $0x18] sm:$0xff]
        %v722 = vld [vmem:[%s5 + $0x20] sm:$0xff]
        %v723 = vld [vmem:[%s5 + $0x28] sm:$0xff]
        %v724 = vld [vmem:[%s5 + $0x30] sm:$0xff]
        %v725 = vld [vmem:[%s5 + $0x38] sm:$0xff]
        %727 = vset.pattern.permute.xlu0 0
        %728 = vperm.xlu0 %727, %v718
        %v729 = vpop.permute.xlu0 %728
        %732 = vset.pattern.permute.xlu0 0
        %733 = vperm.xlu0 %732, %v719
        %v734 = vpop.permute.xlu0 %733
        %737 = vset.pattern.permute.xlu0 0
        %738 = vperm.xlu0 %737, %v720
        %v739 = vpop.permute.xlu0 %738
        %742 = vset.pattern.permute.xlu0 0
        %743 = vperm.xlu0 %742, %v721
        %v744 = vpop.permute.xlu0 %743
        %747 = vset.pattern.permute.xlu0 0
        %748 = vperm.xlu0 %747, %v722
        %v749 = vpop.permute.xlu0 %748
        %752 = vset.pattern.permute.xlu0 0
        %753 = vperm.xlu0 %752, %v723
        %v754 = vpop.permute.xlu0 %753
        %757 = vset.pattern.permute.xlu0 0
        %758 = vperm.xlu0 %757, %v724
        %v759 = vpop.permute.xlu0 %758
        %762 = vset.pattern.permute.xlu0 0
        %763 = vperm.xlu0 %762, %v725
        %v764 = vpop.permute.xlu0 %763
        %v766 = vmul.f32 %v702, %v729
        %v767 = vmul.f32 %v703, %v729
        %v768 = vmul.f32 %v704, %v734
        %v769 = vmul.f32 %v705, %v734
        %v770 = vmul.f32 %v706, %v739
        %v771 = vmul.f32 %v707, %v739
        %v772 = vmul.f32 %v708, %v744
        %v773 = vmul.f32 %v709, %v744
        %v774 = vmul.f32 %v710, %v749
        %v775 = vmul.f32 %v711, %v749
        %v776 = vmul.f32 %v712, %v754
        %v777 = vmul.f32 %v713, %v754
        %v778 = vmul.f32 %v714, %v759
        %v779 = vmul.f32 %v715, %v759
        %v780 = vmul.f32 %v716, %v764
        %v781 = vmul.f32 %v717, %v764
        %v782 = vadd.f32 %v766, %v768
        %v783 = vadd.f32 %v782, %v770
        %v784 = vadd.f32 %v783, %v772
        %v785 = vadd.f32 %v784, %v774
        %v786 = vadd.f32 %v785, %v776
        %v787 = vadd.f32 %v786, %v778
        %v788 = vadd.f32 %v787, %v780
        %v789 = vrot.slane %v788, 4
        %v790 = vadd.f32 %v788, %v789
        %v791 = vrot.slane %v790, 2
        %v792 = vadd.f32 %v790, %v791
        %v793 = vrot.slane %v792, 1
        %v794 = vadd.f32 %v792, %v793
        %v795 = vadd.f32 %v767, %v769
        %v796 = vadd.f32 %v795, %v771
        %v797 = vadd.f32 %v796, %v773
        %v798 = vadd.f32 %v797, %v775
        %v799 = vadd.f32 %v798, %v777
        %v800 = vadd.f32 %v799, %v779
        %v801 = vadd.f32 %v800, %v781
        %v802 = vrot.slane %v801, 4
        %v803 = vadd.f32 %v801, %v802
        %v804 = vrot.slane %v803, 2
        %v805 = vadd.f32 %v803, %v804
        %v806 = vrot.slane %v805, 1
        %v807 = vadd.f32 %v805, %v806
        %v808 = vld [vmem:[#allocation2] sm:$0x1]
        %810 = vset.pattern.permute.xlu0 0
        %811 = vperm.xlu0 %810, %v808
        %v812 = vpop.permute.xlu0 %811
        %v814 = vlaneseq
        %v815 = vshrl.u32 %v814, 7
        %v816 = vsub.s32 0, %v815
        %v817 = vrot.slane %v812, %v816
        %v818 = vadd.f32 %v794, %v817
        %v819 = vadd.f32 %v807, %v817
        %v822 = vcombine.low %v818, %v819
        %v824 = vunpack.c.l.s4 1966171168
        %v825 = vunpack.c.0.s8 %v824
        %v826 = vlaneseq
        %v827 = vshrl.u32 %v826, 7
        %v828 = vsub.s32 %v825, %v827
        %v829 = vrot.slane %v822, %v828
        %v831 = vunpack.c.l.s4 1966171168
        %v832 = vunpack.c.0.s8 %v831
        %v833 = vlaneseq
        %v834 = vshrl.u32 %v833, 7
        %v835 = vsub.s32 %v832, %v834
        %v836 = vrot.slane %v829, %v835
        %v838 = vlaneseq
        %vm839 = vcmp.ge.s32.totalorder %v838, 0
        %vm840 = vcmp.lt.s32.totalorder %v838, 256
        %vm841 = vmand %vm839, %vm840
        %842 = vst.msk [vmem:[%s326] sm:$0x3] %vm841, %v836
        %s843 = sand.u32 %s183, 1
        %s844 = scalar_lea.sflag [#allocation5], %s843
        %s845 = sand.u32 %s183, 1
        %s846 = smul.addr %s845, 2
        %s847 = scalar_lea.vmem [#allocation4], %s846
        // Predicated region
        $region87: #{tpu_custom_call.1} parent=81 // pred_check
          %p848 = pneg %p193
        $region88: #{tpu_custom_call.1} parent=81 // pred_check_branch
          %850 = sbr.rel (%p848) target = $region90
        $region89: #{tpu_custom_call.1} parent=81 // pred_region
          %s851 = smul.u32 2, %s23
          %s853 = ssub.s32 32, 32
          %854 = vsyncadd %s844, %s853
          %s855 = smul.addr %s851, 16
          %s856 = scalar_lea.hbm %s7, %s855
          %s858 = sshll.u32 %s847, 4
          %s859 = int_to_ptr.vmem [resolvable:$true] %s858
          %861 = dma.vmem_to_hbm [thread:$0]  %s859, 32, %s856, %s844
        $region90: #{tpu_custom_call.1} parent=81 // pred_fallthru
          _
      $region82: #{tpu_custom_call.1} parent=5 // pred_fallthru
        _
      %p862 = scmp.le.s32.totalorder 2, %s18
      // Predicated region
      $region91: #{tpu_custom_call.1} parent=5 // pred_check
        %p863 = pneg %p862
      $region92: #{tpu_custom_call.1} parent=5 // pred_check_branch
        %865 = sbr.rel (%p863) target = $region94
      $region93: #{tpu_custom_call.1} parent=5 // pred_region
        %s866 = ssub.s32 %s18, 2
        // Predicated region
        $region95: #{tpu_custom_call.1} parent=93 // pred_check
          %p867 = pneg %p199
        $region96: #{tpu_custom_call.1} parent=93 // pred_check_branch
          %869 = sbr.rel (%p867) target = $region98
        $region97: #{tpu_custom_call.1} parent=93 // pred_region
          %s870 = sand.u32 %s184, 1
          %s871 = scalar_lea.sflag [#allocation5], %s870
          %s872 = sand.u32 %s184, 1
          %s873 = smul.addr %s872, 2
          %s874 = scalar_lea.vmem [#allocation4], %s873
          %875 = dma.done %s871, 32
        $region98: #{tpu_custom_call.1} parent=93 // pred_fallthru
          _
      $region94: #{tpu_custom_call.1} parent=5 // pred_fallthru
        _
    $region6: #{tpu_custom_call.1} parent=1 // loop_footer
      %s22 = sadd.s32 1, %s18
    $region7: #{tpu_custom_call.1} parent=1 // loop_footer_branch
      %17 = sbr.rel target = $region3
    $region8: #{tpu_custom_call.1} parent=1 // loop_exit
      _
    %876 = vsyncpa [#allocation5], 1
    %s877 = scalar_lea.sflag [#allocation5], 1
    %878 = vsyncpa %s877, 1

</llo_original>
